<compile_context>
chip_gen: v6e
topology: v6e:2x2x1
jax: 0.10.0
libtpu: 0.0.40
codegen_flags: <defaults>
</compile_context>

<pallas_src>
import functools
import math

import jax
import jax.numpy as jnp
from jax.experimental import pallas as pl
from jax.experimental.pallas import tpu as pltpu


# ----------------------------------------------------------------------------
# Small helpers
# ----------------------------------------------------------------------------
@functools.lru_cache(maxsize=None)
def _vmem_limit_bytes():
    # Explicit scoped-VMEM budget: ~3/4 of physical VMEM, capped at 100 MiB
    # (=> ~96 MiB on 128 MiB v5e/v6e, ~48 MiB on 64 MiB v7x).
    try:
        cap = int(pltpu.get_tpu_info().vmem_capacity_bytes)
    except Exception:
        cap = 64 * 1024 * 1024
    return int(min(cap * 3 // 4, 100 * 1024 * 1024))


def _cparams(dims):
    return pltpu.CompilerParams(dimension_semantics=dims,
                                vmem_limit_bytes=_vmem_limit_bytes())


def _seqs_per_block(B, T, target_rows=512):
    """Whole sequences per stem grid step (folds batch into the matmul M dim)."""
    if T % 8 != 0:                       # only use the flatten path when sublane-aligned
        return 1
    k = max(1, min(B, max(1, target_rows // T)))
    if B > 1:
        k = min(k, max(1, B // 2))       # keep grid >= 2 (dual TensorCore on v7x)
    return k


def _row_tile(M, cap=512):
    """FFN row tile: as large as possible (<=512), but keep >= 2 grid steps."""
    tm = min(cap, M)
    if tm == M and M >= 16:
        half = (((M + 1) // 2) + 7) // 8 * 8
        if half < M:
            tm = half
    return tm


# ----------------------------------------------------------------------------
# Input stem: conv(k=1)+ReLU + embed Linear + LayerNorm+ReLU + sqrt(d)*x + PE
# ----------------------------------------------------------------------------
def _stem_kernel(x_ref, cw_ref, cb_ref, ew_ref, eb_ref, g_ref, b_ref, pe_ref,
                 o_ref, *, sqrt_d, eps):
    kk, T, idim = x_ref.shape
    x = x_ref[...].reshape(kk * T, idim)            # fold sequences into matmul M rows
    # Conv1d(kernel_size=1) == per-timestep linear, + ReLU
    h = jnp.dot(x.astype(jnp.bfloat16), cw_ref[...],
                preferred_element_type=jnp.float32) + cb_ref[...]
    h = jnp.maximum(h, 0.0)
    # encoder input layer: Linear
    h = jnp.dot(h.astype(jnp.bfloat16), ew_ref[...],
                preferred_element_type=jnp.float32) + eb_ref[...]
    # LayerNorm (f32 stats, eps=1e-5 like torch.nn.LayerNorm default) + ReLU
    mu = jnp.mean(h, axis=-1, keepdims=True)
    var = jnp.mean((h - mu) * (h - mu), axis=-1, keepdims=True)
    h = (h - mu) * jax.lax.rsqrt(var + eps) * g_ref[...] + b_ref[...]
    h = jnp.maximum(h, 0.0)
    # x * sqrt(d_model) + positional encoding (fused, no extra HBM pass)
    h = h * sqrt_d
    o_ref[...] = h.reshape(kk, T, -1) + pe_ref[...][None]


def pallas_input_stem(x_btd, conv_w, conv_b, embed_w, embed_b, ln_g, ln_b, pe,
                      *, eps=1e-5):
    B, T, idim = x_btd.shape
    bdim = conv_w.shape[1]
    adim = embed_w.shape[1]
    k = _seqs_per_block(B, T)
    kern = functools.partial(_stem_kernel, sqrt_d=math.sqrt(adim), eps=eps)
    return pl.pallas_call(
        kern,
        out_shape=jax.ShapeDtypeStruct((B, T, adim), jnp.float32),
        grid=(pl.cdiv(B, k),),
        in_specs=[
            pl.BlockSpec((k, T, idim), lambda b: (b, 0, 0)),
            pl.BlockSpec((idim, bdim), lambda b: (0, 0)),
            pl.BlockSpec((1, bdim), lambda b: (0, 0)),
            pl.BlockSpec((bdim, adim), lambda b: (0, 0)),
            pl.BlockSpec((1, adim), lambda b: (0, 0)),
            pl.BlockSpec((1, adim), lambda b: (0, 0)),
            pl.BlockSpec((1, adim), lambda b: (0, 0)),
            pl.BlockSpec((T, adim), lambda b: (0, 0)),
        ],
        out_specs=pl.BlockSpec((k, T, adim), lambda b: (b, 0, 0)),
        compiler_params=_cparams(("parallel",)),
    )(x_btd, conv_w, conv_b, embed_w, embed_b, ln_g, ln_b, pe[:T])


# ----------------------------------------------------------------------------
# Attention sublayer: pre-LN -> fused QKV -> batched-head attention -> out proj
# -> residual.  One sequence per grid step; all heads in one 3-D MXU pass.
# TODO(synk): flash-style KV tiling (online softmax) for very long T; here the full
# (H, T, T) f32 score block is materialized per sequence.
# ----------------------------------------------------------------------------
def _attn_block_kernel(len_ref, x_ref, g_ref, b_ref, wqkv_ref, bqkv_ref,
                       wo_ref, bo_ref, o_ref, *, nheads, eps):
    x = x_ref[0]                                     # (T, D) f32
    T, D = x.shape
    H = nheads
    Dk = D // H
    # pre-norm LayerNorm (f32 stats)
    mu = jnp.mean(x, axis=-1, keepdims=True)
    var = jnp.mean((x - mu) * (x - mu), axis=-1, keepdims=True)
    xn = (x - mu) * jax.lax.rsqrt(var + eps) * g_ref[...] + b_ref[...]
    # fused QKV projection: one (T,D)x(D,3D) MXU pass.  1/sqrt(Dk) is already folded
    # into the Q columns/bias at init time (no per-score VPU multiply).
    qkv = jnp.dot(xn.astype(jnp.bfloat16), wqkv_ref[...],
                  preferred_element_type=jnp.float32) + bqkv_ref[...]     # (T, 3D)
    qkvb = qkv.astype(jnp.bfloat16)

    # head split: stack static lane slices along a new (untiled) leading head axis,
    # so attention runs as ONE head-batched dot_general instead of a per-head loop.
    qh = jnp.concatenate(
        [qkvb[None, :, h * Dk:(h + 1) * Dk] for h in range(H)], axis=0)     # (H,T,Dk)
    kh = jnp.concatenate(
        [qkvb[None, :, D + h * Dk:D + (h + 1) * Dk] for h in range(H)], axis=0)
    vh = jnp.concatenate(
        [qkvb[None, :, 2 * D + h * Dk:2 * D + (h + 1) * Dk] for h in range(H)], axis=0)

    # key-padding mask built in-kernel from the scalar-prefetched lengths (SMEM)
    valid = (jax.lax.broadcasted_iota(jnp.int32, (1, 1, T), 2)
             < len_ref[pl.program_id(0)])

    # all heads in one batched MXU pass: (H,T,Dk)x(H,T,Dk) -> (H,T,T)
    s = jax.lax.dot_general(qh, kh, (((2,), (2,)), ((0,), (0,))),
                            preferred_element_type=jnp.float32)
    # finite fill; exp() underflows to exactly 0 for masked keys.  Post-softmax mask
    # dropped: len_b >= 1 is guaranteed (the wrapper slices to max(len_b)).
    s = jnp.where(valid, s, -1e30)
    s = s - jnp.max(s, axis=-1, keepdims=True)
    e = jnp.exp(s)
    p = e * pl.reciprocal(jnp.sum(e, axis=-1, keepdims=True), approx=True)
    # (H,T,T)x(H,T,Dk) -> (H,T,Dk); merge heads with one lane-dense concat
    ctx = jax.lax.dot_general(p.astype(jnp.bfloat16), vh,
                              (((2,), (1,)), ((0,), (0,))),
                              preferred_element_type=jnp.float32)
    ctx2 = jnp.concatenate([ctx[h] for h in range(H)], axis=-1)             # (T, D)
    out = jnp.dot(ctx2.astype(jnp.bfloat16), wo_ref[...],
                  preferred_element_type=jnp.float32) + bo_ref[...]
    o_ref[0] = x + out                               # residual fused


def pallas_attn_sublayer(x, lens, gamma, beta, wqkv, bqkv, wo, bo, *,
                         nheads, eps=1e-12):
    B, T, D = x.shape
    assert D % nheads == 0
    kern = functools.partial(_attn_block_kernel, nheads=nheads, eps=eps)
    grid_spec = pltpu.PrefetchScalarGridSpec(
        num_scalar_prefetch=1,                       # lens (B,) int32 -> SMEM
        grid=(B,),
        in_specs=[
            pl.BlockSpec((1, T, D), lambda b, lens: (b, 0, 0)),
            pl.BlockSpec((1, D), lambda b, lens: (0, 0)),
            pl.BlockSpec((1, D), lambda b, lens: (0, 0)),
            pl.BlockSpec((D, 3 * D), lambda b, lens: (0, 0)),
            pl.BlockSpec((1, 3 * D), lambda b, lens: (0, 0)),
            pl.BlockSpec((D, D), lambda b, lens: (0, 0)),
            pl.BlockSpec((1, D), lambda b, lens: (0, 0)),
        ],
        out_specs=pl.BlockSpec((1, T, D), lambda b, lens: (b, 0, 0)),
    )
    return pl.pallas_call(
        kern,
        out_shape=jax.ShapeDtypeStruct((B, T, D), jnp.float32),
        grid_spec=grid_spec,
        compiler_params=_cparams(("parallel",)),
    )(lens, x, gamma, beta, wqkv, bqkv, wo, bo)


# ----------------------------------------------------------------------------
# FFN sublayer: pre-LN -> W1+ReLU -> W2 -> residual, row-tiled over M = B*T
# ----------------------------------------------------------------------------
def _ffn_kernel(x_ref, g_ref, b_ref, w1_ref, b1_ref, w2_ref, b2_ref, o_ref, *, eps):
    x = x_ref[...]                                   # (TM, D) f32
    mu = jnp.mean(x, axis=-1, keepdims=True)
    var = jnp.mean((x - mu) * (x - mu), axis=-1, keepdims=True)
    xn = (x - mu) * jax.lax.rsqrt(var + eps) * g_ref[...] + b_ref[...]
    h = jnp.dot(xn.astype(jnp.bfloat16), w1_ref[...],
                preferred_element_type=jnp.float32) + b1_ref[...]
    h = jnp.maximum(h, 0.0)
    h = jnp.dot(h.astype(jnp.bfloat16), w2_ref[...],
                preferred_element_type=jnp.float32) + b2_ref[...]
    o_ref[...] = x + h                               # residual fused


def pallas_ffn_sublayer(x2d, gamma, beta, w1, b1, w2, b2, *, eps=1e-12):
    M, D = x2d.shape
    FF = w1.shape[1]
    TM = _row_tile(M)                                # up to 512 rows per step
    kern = functools.partial(_ffn_kernel, eps=eps)
    return pl.pallas_call(
        kern,
        out_shape=jax.ShapeDtypeStruct((M, D), jnp.float32),
        grid=(pl.cdiv(M, TM),),
        in_specs=[
            pl.BlockSpec((TM, D), lambda i: (i, 0)),
            pl.BlockSpec((1, D), lambda i: (0, 0)),
            pl.BlockSpec((1, D), lambda i: (0, 0)),
            pl.BlockSpec((D, FF), lambda i: (0, 0)),
            pl.BlockSpec((1, FF), lambda i: (0, 0)),
            pl.BlockSpec((FF, D), lambda i: (0, 0)),
            pl.BlockSpec((1, D), lambda i: (0, 0)),
        ],
        out_specs=pl.BlockSpec((TM, D), lambda i: (i, 0)),
        compiler_params=_cparams(("parallel",)),
    )(x2d, gamma, beta, w1, b1, w2, b2)


# ----------------------------------------------------------------------------
# Final LayerNorm + mean/std pooling + (128-padded) output projection, B-tiled
# ----------------------------------------------------------------------------
def _pool_proj_kernel(h_ref, g_ref, b_ref, wm_ref, ws_ref, ob_ref,
                      hid_ref, pred_ref, *, eps, inv_t, inv_nm1):
    h = h_ref[0]                                     # (T, D) f32, one sequence
    mu = jnp.mean(h, axis=-1, keepdims=True)
    var = jnp.mean((h - mu) * (h - mu), axis=-1, keepdims=True)
    hn = (h - mu) * jax.lax.rsqrt(var + eps) * g_ref[...] + b_ref[...]
    # single-pass mean / unbiased std over time (includes padded frames, like the ref)
    s1 = jnp.sum(hn, axis=0, keepdims=True)          # (1, D)
    s2 = jnp.sum(hn * hn, axis=0, keepdims=True)     # (1, D)
    mean = s1 * inv_t
    var_t = (s2 - s1 * mean) * inv_nm1               # ddof=1 (torch.std); NaN if T==1
    std = jnp.sqrt(jnp.maximum(var_t, 0.0))
    hid_ref[0] = jnp.concatenate([mean, std], axis=-1)          # (1, 2D)
    # output projection with out_w pre-split into mean/std halves (128-lane padded)
    pred = (jnp.dot(mean.astype(jnp.bfloat16), wm_ref[...],
                    preferred_element_type=jnp.float32)
            + jnp.dot(std.astype(jnp.bfloat16), ws_ref[...],
                      preferred_element_type=jnp.float32)
            + ob_ref[...])
    pred_ref[0] = pred


def pallas_pool_proj(h_btd, ln_g, ln_b, wm, ws, out_b, *, odim, eps=1e-12):
    B, T, D = h_btd.shape
    odim_pad = wm.shape[1]
    inv_t = 1.0 / T
    inv_nm1 = (1.0 / (T - 1)) if T > 1 else float("nan")   # mirrors torch.std at T==1
    kern = functools.partial(_pool_proj_kernel, eps=eps, inv_t=inv_t, inv_nm1=inv_nm1)
    hid3, pred3 = pl.pallas_call(
        kern,
        out_shape=(jax.ShapeDtypeStruct((B, 1, 2 * D), jnp.float32),
                   jax.ShapeDtypeStruct((B, 1, odim_pad), jnp.float32)),
        grid=(B,),
        in_specs=[
            pl.BlockSpec((1, T, D), lambda b: (b, 0, 0)),
            pl.BlockSpec((1, D), lambda b: (0, 0)),
            pl.BlockSpec((1, D), lambda b: (0, 0)),
            pl.BlockSpec((D, odim_pad), lambda b: (0, 0)),
            pl.BlockSpec((D, odim_pad), lambda b: (0, 0)),
            pl.BlockSpec((1, odim_pad), lambda b: (0, 0)),
        ],
        out_specs=(pl.BlockSpec((1, 1, 2 * D), lambda b: (b, 0, 0)),
                   pl.BlockSpec((1, 1, odim_pad), lambda b: (b, 0, 0))),
        compiler_params=_cparams(("parallel",)),
    )(h_btd, ln_g, ln_b, wm, ws, out_b)
    return hid3[:, 0, :], pred3[:, 0, :odim]


# ----------------------------------------------------------------------------
# Parameters (deterministic, synthetic).  Matmul weights stored in bf16;
# biases / LayerNorm params / PE in f32.
# ----------------------------------------------------------------------------
def _dense(key, k_in, k_out, scale=0.05):
    kw, kb = jax.random.split(key)
    w = jax.random.normal(kw, (k_in, k_out), jnp.float32) * scale
    b = jax.random.normal(kb, (k_out,), jnp.float32) * scale
    return w, b


def init_params(key, *, idim, odim, adim, bdim, elayers, linear_units, nheads, max_len):
    keys = jax.random.split(key, 4 + elayers)
    p = {"nheads": nheads, "odim": odim}

    cw, cb = _dense(keys[0], idim, bdim)
    p["conv_w"], p["conv_b"] = cw.astype(jnp.bfloat16), cb.reshape(1, bdim)
    ew, eb = _dense(keys[1], bdim, adim)
    p["embed_w"], p["embed_b"] = ew.astype(jnp.bfloat16), eb.reshape(1, adim)
    p["embed_ln_g"] = jnp.ones((1, adim), jnp.float32)
    p["embed_ln_b"] = jnp.zeros((1, adim), jnp.float32)
    p["after_ln_g"] = jnp.ones((1, adim), jnp.float32)
    p["after_ln_b"] = jnp.zeros((1, adim), jnp.float32)

    # output projection: pre-split into mean/std halves, zero-padded to 128 lanes
    ow, ob = _dense(keys[2], 2 * adim, odim)
    odim_pad = ((odim + 127) // 128) * 128
    wm = jnp.zeros((adim, odim_pad), jnp.float32).at[:, :odim].set(ow[:adim])
    ws = jnp.zeros((adim, odim_pad), jnp.float32).at[:, :odim].set(ow[adim:])
    obp = jnp.zeros((1, odim_pad), jnp.float32).at[0, :odim].set(ob)
    p["out_wm"], p["out_ws"], p["out_b"] = (wm.astype(jnp.bfloat16),
                                            ws.astype(jnp.bfloat16), obp)

    # sinusoidal positional encoding (ESPnet PositionalEncoding)
    pos = jnp.arange(max_len, dtype=jnp.float32)[:, None]
    div = jnp.exp(jnp.arange(0, adim, 2, dtype=jnp.float32) * (-math.log(10000.0) / adim))
    pe = jnp.zeros((max_len, adim), jnp.float32)
    pe = pe.at[:, 0::2].set(jnp.sin(pos * div))
    pe = pe.at[:, 1::2].set(jnp.cos(pos * div))
    p["pe"] = pe

    inv_sqrt_dk = 1.0 / math.sqrt(adim // nheads)
    layers = []
    for li in range(elayers):
        lk = jax.random.split(keys[4 + li], 6)
        lyr = {}
        lyr["ln1_g"] = jnp.ones((1, adim), jnp.float32)
        lyr["ln1_b"] = jnp.zeros((1, adim), jnp.float32)
        lyr["ln2_g"] = jnp.ones((1, adim), jnp.float32)
        lyr["ln2_b"] = jnp.zeros((1, adim), jnp.float32)
        wq, bq = _dense(lk[0], adim, adim)
        wk, bk = _dense(lk[1], adim, adim)
        wv, bv = _dense(lk[2], adim, adim)
        # concatenated QKV (one wide MXU matmul); 1/sqrt(Dk) folded into the Q part
        lyr["wqkv"] = jnp.concatenate([wq * inv_sqrt_dk, wk, wv],
                                      axis=1).astype(jnp.bfloat16)
        lyr["bqkv"] = jnp.concatenate([bq * inv_sqrt_dk, bk, bv]).reshape(1, 3 * adim)
        wo, bo = _dense(lk[3], adim, adim)
        lyr["wo"], lyr["bo"] = wo.astype(jnp.bfloat16), bo.reshape(1, adim)
        w1, b1 = _dense(lk[4], adim, linear_units)
        lyr["w1"], lyr["b1"] = w1.astype(jnp.bfloat16), b1.reshape(1, linear_units)
        w2, b2 = _dense(lk[5], linear_units, adim)
        lyr["w2"], lyr["b2"] = w2.astype(jnp.bfloat16), b2.reshape(1, adim)
        layers.append(lyr)
    p["layers"] = layers
    return p


# ----------------------------------------------------------------------------
# Forward pass (eval mode: dropout = identity, loss_function='ce')
# ----------------------------------------------------------------------------
def my_transformer_forward(params, x_btd, len_b, y_b=None):
    T = int(max(len_b))
    x_btd = x_btd[:, :T]
    B, T, idim = x_btd.shape
    lens = jnp.asarray(len_b, jnp.int32)

    nheads = params["nheads"]
    adim = params["embed_w"].shape[1]

    # input stem: conv(k=1)+ReLU + embed linear + LN+ReLU + scale + PE (one kernel)
    x = pallas_input_stem(x_btd, params["conv_w"], params["conv_b"],
                          params["embed_w"], params["embed_b"],
                          params["embed_ln_g"], params["embed_ln_b"],
                          params["pe"])                               # (B, T, adim)

    # pre-norm encoder blocks: 2 fused kernels per layer
    for lyr in params["layers"]:
        x = pallas_attn_sublayer(x, lens, lyr["ln1_g"], lyr["ln1_b"],
                                 lyr["wqkv"], lyr["bqkv"],
                                 lyr["wo"], lyr["bo"], nheads=nheads)
        x2d = pallas_ffn_sublayer(x.reshape(B * T, adim),
                                  lyr["ln2_g"], lyr["ln2_b"],
                                  lyr["w1"], lyr["b1"], lyr["w2"], lyr["b2"])
        x = x2d.reshape(B, T, adim)

    # final LayerNorm + mean/std pooling + output projection (one kernel, B-tiled)
    h_bd, pred_bd = pallas_pool_proj(x, params["after_ln_g"], params["after_ln_b"],
                                     params["out_wm"], params["out_ws"],
                                     params["out_b"], odim=params["odim"])

    if y_b is not None:
        # TODO(synk): CE loss over the tiny (B, odim) logits stays in plain JAX glue.
        y_arr = jnp.asarray(y_b, jnp.int32)
        logz = jax.nn.logsumexp(pred_bd, axis=-1)
        picked = jnp.take_along_axis(pred_bd, y_arr[:, None], axis=-1)[:, 0]
        loss = jnp.mean(logz - picked)
    else:
        loss = 0.0
    return {"loss": loss, "pred": pred_bd, "hidden": h_bd}


# ----------------------------------------------------------------------------
if __name__ == "__main__":
    B, T, idim = 2, 8, 16
    bdim, adim, linear_units, elayers, nheads, odim = 32, 32, 64, 2, 4, 5

    key = jax.random.PRNGKey(0)
    kx, kp = jax.random.split(key)
    x = jax.random.normal(kx, (B, T, idim), jnp.float32)
    lens = [8, 6]
    y = jnp.array([1, 3], jnp.int32)

    params = init_params(kp, idim=idim, odim=odim, adim=adim, bdim=bdim,
                         elayers=elayers, linear_units=linear_units,
                         nheads=nheads, max_len=T)

    out = my_transformer_forward(params, x, lens, y)
    jax.block_until_ready((out["loss"], out["pred"], out["hidden"]))
    assert out["pred"].shape == (B, odim)
    assert out["hidden"].shape == (B, 2 * adim)
    print("KERNEL_OK")
</pallas_src>

<mosaic_0001>
module attributes {stable_mosaic.version = 11 : i64} {
  func.func @_stem_kernel(%arg0: i32, %arg1: memref<1x8x16xf32, #tpu.memory_space<vmem>>, %arg2: memref<16x32xbf16, #tpu.memory_space<vmem>>, %arg3: memref<1x32xf32, #tpu.memory_space<vmem>>, %arg4: memref<32x32xbf16, #tpu.memory_space<vmem>>, %arg5: memref<1x32xf32, #tpu.memory_space<vmem>>, %arg6: memref<1x32xf32, #tpu.memory_space<vmem>>, %arg7: memref<1x32xf32, #tpu.memory_space<vmem>>, %arg8: memref<8x32xf32, #tpu.memory_space<vmem>>, %arg9: memref<1x8x32xf32, #tpu.memory_space<vmem>>) attributes {dimension_semantics = [#tpu.dimension_semantics<parallel>], iteration_bounds = array<i64: 2>, scalar_prefetch = 0 : i64, scratch_operands = 0 : i64, tpu.core_type = #tpu.core_type<tc>, window_params = [{transform_indices = @transform_0, window_bounds = array<i64: 1, 8, 16>}, {pipeline_mode = #tpu.pipeline_mode<synchronous>, transform_indices = @transform_1, window_bounds = array<i64: 16, 32>}, {pipeline_mode = #tpu.pipeline_mode<synchronous>, transform_indices = @transform_2, window_bounds = array<i64: 1, 32>}, {pipeline_mode = #tpu.pipeline_mode<synchronous>, transform_indices = @transform_3, window_bounds = array<i64: 32, 32>}, {pipeline_mode = #tpu.pipeline_mode<synchronous>, transform_indices = @transform_4, window_bounds = array<i64: 1, 32>}, {pipeline_mode = #tpu.pipeline_mode<synchronous>, transform_indices = @transform_5, window_bounds = array<i64: 1, 32>}, {pipeline_mode = #tpu.pipeline_mode<synchronous>, transform_indices = @transform_6, window_bounds = array<i64: 1, 32>}, {pipeline_mode = #tpu.pipeline_mode<synchronous>, transform_indices = @transform_7, window_bounds = array<i64: 8, 32>}, {transform_indices = @transform_8, window_bounds = array<i64: 1, 8, 32>}]} {
    %c0 = arith.constant 0 : index
    %c0_0 = arith.constant 0 : index
    %c0_1 = arith.constant 0 : index
    %0 = vector.load %arg1[%c0, %c0_0, %c0_1] : memref<1x8x16xf32, #tpu.memory_space<vmem>>, vector<1x8x16xf32>
    %1 = vector.shape_cast %0 : vector<1x8x16xf32> to vector<8x16xf32>
    %2 = arith.truncf %1 : vector<8x16xf32> to vector<8x16xbf16>
    %c0_2 = arith.constant 0 : index
    %c0_3 = arith.constant 0 : index
    %3 = vector.load %arg2[%c0_2, %c0_3] : memref<16x32xbf16, #tpu.memory_space<vmem>>, vector<16x32xbf16>
    %cst = arith.constant dense<0.000000e+00> : vector<8x32xf32>
    %4 = tpu.matmul %2, %3, %cst {dimension_numbers = #tpu.dot_dimension_numbers<[1], [0], [0], [1], [0, 0, 1, 1], [], []>} : vector<8x16xbf16>, vector<16x32xbf16>, vector<8x32xf32> -> vector<8x32xf32>
    %c0_4 = arith.constant 0 : index
    %c0_5 = arith.constant 0 : index
    %5 = vector.load %arg3[%c0_4, %c0_5] : memref<1x32xf32, #tpu.memory_space<vmem>>, vector<1x32xf32>
    %6 = vector.broadcast %5 : vector<1x32xf32> to vector<8x32xf32>
    %7 = arith.addf %4, %6 : vector<8x32xf32>
    %cst_6 = arith.constant 0.000000e+00 : f32
    %8 = vector.broadcast %cst_6 : f32 to vector<8x32xf32>
    %9 = arith.maximumf %7, %8 : vector<8x32xf32>
    %10 = arith.truncf %9 : vector<8x32xf32> to vector<8x32xbf16>
    %c0_7 = arith.constant 0 : index
    %c0_8 = arith.constant 0 : index
    %11 = vector.load %arg4[%c0_7, %c0_8] : memref<32x32xbf16, #tpu.memory_space<vmem>>, vector<32x32xbf16>
    %cst_9 = arith.constant dense<0.000000e+00> : vector<8x32xf32>
    %12 = tpu.matmul %10, %11, %cst_9 {dimension_numbers = #tpu.dot_dimension_numbers<[1], [0], [0], [1], [0, 0, 1, 1], [], []>} : vector<8x32xbf16>, vector<32x32xbf16>, vector<8x32xf32> -> vector<8x32xf32>
    %c0_10 = arith.constant 0 : index
    %c0_11 = arith.constant 0 : index
    %13 = vector.load %arg5[%c0_10, %c0_11] : memref<1x32xf32, #tpu.memory_space<vmem>>, vector<1x32xf32>
    %14 = vector.broadcast %13 : vector<1x32xf32> to vector<8x32xf32>
    %15 = arith.addf %12, %14 : vector<8x32xf32>
    %cst_12 = arith.constant dense<0.000000e+00> : vector<8xf32>
    %16 = vector.multi_reduction <add>, %15, %cst_12 [1] : vector<8x32xf32> to vector<8xf32>
    %17 = vector.shape_cast %16 : vector<8xf32> to vector<8x1xf32>
    %cst_13 = arith.constant 3.200000e+01 : f32
    %18 = vector.broadcast %cst_13 : f32 to vector<8x1xf32>
    %19 = arith.divf %17, %18 : vector<8x1xf32>
    %20 = vector.broadcast %19 : vector<8x1xf32> to vector<8x32xf32>
    %21 = arith.subf %15, %20 : vector<8x32xf32>
    %22 = vector.broadcast %19 : vector<8x1xf32> to vector<8x32xf32>
    %23 = arith.subf %15, %22 : vector<8x32xf32>
    %24 = arith.mulf %21, %23 : vector<8x32xf32>
    %cst_14 = arith.constant dense<0.000000e+00> : vector<8xf32>
    %25 = vector.multi_reduction <add>, %24, %cst_14 [1] : vector<8x32xf32> to vector<8xf32>
    %26 = vector.shape_cast %25 : vector<8xf32> to vector<8x1xf32>
    %cst_15 = arith.constant 3.200000e+01 : f32
    %27 = vector.broadcast %cst_15 : f32 to vector<8x1xf32>
    %28 = arith.divf %26, %27 : vector<8x1xf32>
    %29 = vector.broadcast %19 : vector<8x1xf32> to vector<8x32xf32>
    %30 = arith.subf %15, %29 : vector<8x32xf32>
    %cst_16 = arith.constant 9.99999974E-6 : f32
    %31 = vector.broadcast %cst_16 : f32 to vector<8x1xf32>
    %32 = arith.addf %28, %31 : vector<8x1xf32>
    %33 = math.rsqrt %32 : vector<8x1xf32>
    %34 = vector.broadcast %33 : vector<8x1xf32> to vector<8x32xf32>
    %35 = arith.mulf %30, %34 : vector<8x32xf32>
    %c0_17 = arith.constant 0 : index
    %c0_18 = arith.constant 0 : index
    %36 = vector.load %arg6[%c0_17, %c0_18] : memref<1x32xf32, #tpu.memory_space<vmem>>, vector<1x32xf32>
    %37 = vector.broadcast %36 : vector<1x32xf32> to vector<8x32xf32>
    %38 = arith.mulf %35, %37 : vector<8x32xf32>
    %c0_19 = arith.constant 0 : index
    %c0_20 = arith.constant 0 : index
    %39 = vector.load %arg7[%c0_19, %c0_20] : memref<1x32xf32, #tpu.memory_space<vmem>>, vector<1x32xf32>
    %40 = vector.broadcast %39 : vector<1x32xf32> to vector<8x32xf32>
    %41 = arith.addf %38, %40 : vector<8x32xf32>
    %cst_21 = arith.constant 0.000000e+00 : f32
    %42 = vector.broadcast %cst_21 : f32 to vector<8x32xf32>
    %43 = arith.maximumf %41, %42 : vector<8x32xf32>
    %cst_22 = arith.constant 5.65685415 : f32
    %44 = vector.broadcast %cst_22 : f32 to vector<8x32xf32>
    %45 = arith.mulf %43, %44 : vector<8x32xf32>
    %46 = vector.shape_cast %45 : vector<8x32xf32> to vector<1x8x32xf32>
    %c0_23 = arith.constant 0 : index
    %c0_24 = arith.constant 0 : index
    %47 = vector.load %arg8[%c0_23, %c0_24] : memref<8x32xf32, #tpu.memory_space<vmem>>, vector<8x32xf32>
    %48 = vector.shape_cast %47 : vector<8x32xf32> to vector<1x8x32xf32>
    %49 = arith.addf %46, %48 : vector<1x8x32xf32>
    %c0_25 = arith.constant 0 : index
    %c0_26 = arith.constant 0 : index
    %c0_27 = arith.constant 0 : index
    %50 = vector.load %arg9[%c0_25, %c0_26, %c0_27] : memref<1x8x32xf32, #tpu.memory_space<vmem>>, vector<1x8x32xf32>
    tpu.vector_store %arg9[%c0_25, %c0_26, %c0_27], %49 {strides = array<i32>} : memref<1x8x32xf32, #tpu.memory_space<vmem>>, vector<1x8x32xf32>,
    return
  }
  func.func @transform_0(%arg0: i32) -> (i32, i32, i32) {
    %c0_i32 = arith.constant 0 : i32
    %c0_i32_0 = arith.constant 0 : i32
    %c0_i32_1 = arith.constant 0 : i32
    return %arg0, %c0_i32, %c0_i32_0 : i32, i32, i32
  }
  func.func @transform_1(%arg0: i32) -> (i32, i32) {
    %c0_i32 = arith.constant 0 : i32
    %c0_i32_0 = arith.constant 0 : i32
    %c0_i32_1 = arith.constant 0 : i32
    return %c0_i32, %c0_i32_0 : i32, i32
  }
  func.func @transform_2(%arg0: i32) -> (i32, i32) {
    %c0_i32 = arith.constant 0 : i32
    %c0_i32_0 = arith.constant 0 : i32
    %c0_i32_1 = arith.constant 0 : i32
    return %c0_i32, %c0_i32_0 : i32, i32
  }
  func.func @transform_3(%arg0: i32) -> (i32, i32) {
    %c0_i32 = arith.constant 0 : i32
    %c0_i32_0 = arith.constant 0 : i32
    %c0_i32_1 = arith.constant 0 : i32
    return %c0_i32, %c0_i32_0 : i32, i32
  }
  func.func @transform_4(%arg0: i32) -> (i32, i32) {
    %c0_i32 = arith.constant 0 : i32
    %c0_i32_0 = arith.constant 0 : i32
    %c0_i32_1 = arith.constant 0 : i32
    return %c0_i32, %c0_i32_0 : i32, i32
  }
  func.func @transform_5(%arg0: i32) -> (i32, i32) {
    %c0_i32 = arith.constant 0 : i32
    %c0_i32_0 = arith.constant 0 : i32
    %c0_i32_1 = arith.constant 0 : i32
    return %c0_i32, %c0_i32_0 : i32, i32
  }
  func.func @transform_6(%arg0: i32) -> (i32, i32) {
    %c0_i32 = arith.constant 0 : i32
    %c0_i32_0 = arith.constant 0 : i32
    %c0_i32_1 = arith.constant 0 : i32
    return %c0_i32, %c0_i32_0 : i32, i32
  }
  func.func @transform_7(%arg0: i32) -> (i32, i32) {
    %c0_i32 = arith.constant 0 : i32
    %c0_i32_0 = arith.constant 0 : i32
    %c0_i32_1 = arith.constant 0 : i32
    return %c0_i32, %c0_i32_0 : i32, i32
  }
  func.func @transform_8(%arg0: i32) -> (i32, i32, i32) {
    %c0_i32 = arith.constant 0 : i32
    %c0_i32_0 = arith.constant 0 : i32
    %c0_i32_1 = arith.constant 0 : i32
    return %arg0, %c0_i32, %c0_i32_0 : i32, i32, i32
  }
}

</mosaic_0001>

<llo_original>
// kernel: tpu_custom_call.1
$region0: #{tpu_custom_call.1}
  #allocation0 [shape = 'u32[]', space=smem, size = 0x4, offset = 0x4, fixed_abs, tag = 'smem constant byte address 0x4 - core index']
  #allocation1 [shape = 'u32[144,128]{1,0:T(1,128)}', space=vmem, size = 0x12000, scoped, tag = 'internal scratch']
  %s0 = inlined_call_operand.hbm [shape: f32[2,8,16], index: 0, kind: input, shape index: {}]
  %s1 = inlined_call_operand.hbm [shape: bf16[16,32], index: 1, kind: input, shape index: {}]
  %s2 = inlined_call_operand.vmem [shape: f32[1,32], index: 2, kind: input, shape index: {}]
  %s3 = inlined_call_operand.hbm [shape: bf16[32,32], index: 3, kind: input, shape index: {}]
  %s4 = inlined_call_operand.vmem [shape: f32[1,32], index: 4, kind: input, shape index: {}]
  %s5 = inlined_call_operand.vmem [shape: f32[1,32], index: 5, kind: input, shape index: {}]
  %s6 = inlined_call_operand.vmem [shape: f32[1,32], index: 6, kind: input, shape index: {}]
  %s7 = inlined_call_operand.vmem [shape: f32[8,32], index: 7, kind: input, shape index: {}]
  %s8 = inlined_call_operand.hbm [shape: f32[2,8,32], index: 8, kind: output, shape index: {}]
  %s9 = sld [smem:[#allocation0]]
  $region77: #{tpu_custom_call.1} parent=0
    _
  %s11 = ssub.s32 1, %s9
  %s12 = scalar_select 0, %s11, %s9
  $region1: #{tpu_custom_call.1} parent=0
    #allocation2 [shape = 'u8[8192]{0}', space=vmem, size = 0x2000, scoped, tag = 'input window, operand 0']
    #allocation3 [shape = 's32[2]{0}', space=sflag, size = 0x8, scoped, tag = 'scoped memory for tpu_custom_call.1']
    #allocation4 [shape = 's32[2]{0}', space=sflag, size = 0x8, scoped, tag = 'scoped memory for tpu_custom_call.1']
    #allocation5 [shape = 'u8[4096]{0}', space=vmem, size = 0x1000, scoped, tag = 'input window, operand 1, single buffered']
    #allocation6 [shape = 's32[1]{0}', space=sflag, size = 0x4, scoped, tag = 'scoped memory for tpu_custom_call.1']
    #allocation7 [shape = 'u8[8192]{0}', space=vmem, size = 0x2000, scoped, tag = 'input window, operand 3, single buffered']
    #allocation8 [shape = 'u8[8192]{0}', space=vmem, size = 0x2000, scoped, tag = 'output window, operand 0']
    %13 = vsyncpa [#allocation3], 0
    %s14 = scalar_lea.sflag [#allocation3], 1
    %15 = vsyncpa %s14, 0
    %16 = vsyncpa [#allocation6], 0
    %17 = vsyncpa [#allocation4], 0
    %s18 = scalar_lea.sflag [#allocation4], 1
    %19 = vsyncpa %s18, 0
    loop: start=0, step=1, limit=4
    $region2: #{tpu_custom_call.1} parent=1 // loop_pre_header
      _
    $region3: #{tpu_custom_call.1} parent=1 // loop_header
      %s21 = sphi 0, %s25
      %p22 = scmp.ge.s32.totalorder %s21, 4
      %s31 = sphi 0, %s33
      %s34 = sphi 0, %s31
      %s35 = sphi 0, %s34
      %s51 = sphi 0, %s35
      %s55 = sphi 0, %s55
      %s57 = sphi 0, %s55
      %s58 = sphi 0, %s57
      %s72 = sphi 0, %s58
      %s76 = sphi 0, %s76
      %s78 = sphi 0, %s76
      %s79 = sphi 0, %s78
      %s93 = sphi 0, %s79
      %s97 = sphi 0, %s97
      %s99 = sphi 0, %s97
      %s100 = sphi 0, %s99
      %s114 = sphi 0, %s100
      %s118 = sphi 0, %s118
      %s120 = sphi 0, %s118
      %s121 = sphi 0, %s120
      %s135 = sphi 0, %s121
      %s139 = sphi 0, %s139
      %s141 = sphi 0, %s139
      %s142 = sphi 0, %s141
      %s156 = sphi 0, %s142
      %s160 = sphi 0, %s160
      %s162 = sphi 0, %s160
      %s163 = sphi 0, %s162
      %s177 = sphi 0, %s163
      %s181 = sphi 0, %s181
      %s183 = sphi 0, %s181
      %s184 = sphi 0, %s183
      %s198 = sphi 0, %s184
      %s204 = sphi 0, %s206
      %s207 = sphi 0, %s204
      %s208 = sphi 0, %s207
      %s224 = sphi 0, %s208
    $region4: #{tpu_custom_call.1} parent=1 // loop_header_branch
      %24 = sbr.rel (%p22) target = $region8
    $region5: #{tpu_custom_call.1} parent=1 // loop_body
      %s26 = ssub.s32 %s21, 1
      %s27 = ssub.s32 %s21, 2
      %s28 = sadd.s32 %s21, 1
      %s29 = ssub.s32 %s21, %s28
      %p30 = scmp.eq.s32.totalorder %s29, 0
      %s32 = sadd.s32 %s31, 1
      %s33 = scalar_select %p30, %s31, %s32
      %p36 = pneg %p30
      %p37 = scmp.eq.s32.totalorder %s21, 1
      %p38 = por %p36, %p37
      %p39 = scmp.ne.s32.totalorder %s31, %s34
      %p40 = scmp.eq.s32.totalorder %s21, 0
      %p41 = por %p39, %p40
      %p42 = scmp.ne.s32.totalorder %s31, %s34
      %p43 = scmp.eq.s32.totalorder %s26, 1
      %p44 = por %p42, %p43
      %p45 = scmp.ne.s32.totalorder %s34, %s35
      %p46 = scmp.eq.s32.totalorder %s26, 0
      %p47 = por %p45, %p46
      %p48 = scmp.ne.s32.totalorder %s34, %s35
      %p49 = scmp.eq.s32.totalorder %s27, 1
      %p50 = por %p48, %p49
      %p52 = scmp.ne.s32.totalorder %s35, %s51
      %p53 = scmp.eq.s32.totalorder %s27, 0
      %p54 = por %p52, %p53
      %s56 = sadd.s32 %s55, 1
      %p59 = scmp.eq.s32.totalorder %s21, 1
      %p60 = scmp.ne.s32.totalorder %s55, %s57
      %p61 = scmp.eq.s32.totalorder %s21, 0
      %p62 = por %p60, %p61
      %p63 = scmp.ne.s32.totalorder %s55, %s57
      %p64 = scmp.eq.s32.totalorder %s26, 1
      %p65 = por %p63, %p64
      %p66 = scmp.ne.s32.totalorder %s57, %s58
      %p67 = scmp.eq.s32.totalorder %s26, 0
      %p68 = por %p66, %p67
      %p69 = scmp.ne.s32.totalorder %s57, %s58
      %p70 = scmp.eq.s32.totalorder %s27, 1
      %p71 = por %p69, %p70
      %p73 = scmp.ne.s32.totalorder %s58, %s72
      %p74 = scmp.eq.s32.totalorder %s27, 0
      %p75 = por %p73, %p74
      %s77 = sadd.s32 %s76, 1
      %p80 = scmp.eq.s32.totalorder %s21, 1
      %p81 = scmp.ne.s32.totalorder %s76, %s78
      %p82 = scmp.eq.s32.totalorder %s21, 0
      %p83 = por %p81, %p82
      %p84 = scmp.ne.s32.totalorder %s76, %s78
      %p85 = scmp.eq.s32.totalorder %s26, 1
      %p86 = por %p84, %p85
      %p87 = scmp.ne.s32.totalorder %s78, %s79
      %p88 = scmp.eq.s32.totalorder %s26, 0
      %p89 = por %p87, %p88
      %p90 = scmp.ne.s32.totalorder %s78, %s79
      %p91 = scmp.eq.s32.totalorder %s27, 1
      %p92 = por %p90, %p91
      %p94 = scmp.ne.s32.totalorder %s79, %s93
      %p95 = scmp.eq.s32.totalorder %s27, 0
      %p96 = por %p94, %p95
      %s98 = sadd.s32 %s97, 1
      %p101 = scmp.eq.s32.totalorder %s21, 1
      %p102 = scmp.ne.s32.totalorder %s97, %s99
      %p103 = scmp.eq.s32.totalorder %s21, 0
      %p104 = por %p102, %p103
      %p105 = scmp.ne.s32.totalorder %s97, %s99
      %p106 = scmp.eq.s32.totalorder %s26, 1
      %p107 = por %p105, %p106
      %p108 = scmp.ne.s32.totalorder %s99, %s100
      %p109 = scmp.eq.s32.totalorder %s26, 0
      %p110 = por %p108, %p109
      %p111 = scmp.ne.s32.totalorder %s99, %s100
      %p112 = scmp.eq.s32.totalorder %s27, 1
      %p113 = por %p111, %p112
      %p115 = scmp.ne.s32.totalorder %s100, %s114
      %p116 = scmp.eq.s32.totalorder %s27, 0
      %p117 = por %p115, %p116
      %s119 = sadd.s32 %s118, 1
      %p122 = scmp.eq.s32.totalorder %s21, 1
      %p123 = scmp.ne.s32.totalorder %s118, %s120
      %p124 = scmp.eq.s32.totalorder %s21, 0
      %p125 = por %p123, %p124
      %p126 = scmp.ne.s32.totalorder %s118, %s120
      %p127 = scmp.eq.s32.totalorder %s26, 1
      %p128 = por %p126, %p127
      %p129 = scmp.ne.s32.totalorder %s120, %s121
      %p130 = scmp.eq.s32.totalorder %s26, 0
      %p131 = por %p129, %p130
      %p132 = scmp.ne.s32.totalorder %s120, %s121
      %p133 = scmp.eq.s32.totalorder %s27, 1
      %p134 = por %p132, %p133
      %p136 = scmp.ne.s32.totalorder %s121, %s135
      %p137 = scmp.eq.s32.totalorder %s27, 0
      %p138 = por %p136, %p137
      %s140 = sadd.s32 %s139, 1
      %p143 = scmp.eq.s32.totalorder %s21, 1
      %p144 = scmp.ne.s32.totalorder %s139, %s141
      %p145 = scmp.eq.s32.totalorder %s21, 0
      %p146 = por %p144, %p145
      %p147 = scmp.ne.s32.totalorder %s139, %s141
      %p148 = scmp.eq.s32.totalorder %s26, 1
      %p149 = por %p147, %p148
      %p150 = scmp.ne.s32.totalorder %s141, %s142
      %p151 = scmp.eq.s32.totalorder %s26, 0
      %p152 = por %p150, %p151
      %p153 = scmp.ne.s32.totalorder %s141, %s142
      %p154 = scmp.eq.s32.totalorder %s27, 1
      %p155 = por %p153, %p154
      %p157 = scmp.ne.s32.totalorder %s142, %s156
      %p158 = scmp.eq.s32.totalorder %s27, 0
      %p159 = por %p157, %p158
      %s161 = sadd.s32 %s160, 1
      %p164 = scmp.eq.s32.totalorder %s21, 1
      %p165 = scmp.ne.s32.totalorder %s160, %s162
      %p166 = scmp.eq.s32.totalorder %s21, 0
      %p167 = por %p165, %p166
      %p168 = scmp.ne.s32.totalorder %s160, %s162
      %p169 = scmp.eq.s32.totalorder %s26, 1
      %p170 = por %p168, %p169
      %p171 = scmp.ne.s32.totalorder %s162, %s163
      %p172 = scmp.eq.s32.totalorder %s26, 0
      %p173 = por %p171, %p172
      %p174 = scmp.ne.s32.totalorder %s162, %s163
      %p175 = scmp.eq.s32.totalorder %s27, 1
      %p176 = por %p174, %p175
      %p178 = scmp.ne.s32.totalorder %s163, %s177
      %p179 = scmp.eq.s32.totalorder %s27, 0
      %p180 = por %p178, %p179
      %s182 = sadd.s32 %s181, 1
      %p185 = scmp.eq.s32.totalorder %s21, 1
      %p186 = scmp.ne.s32.totalorder %s181, %s183
      %p187 = scmp.eq.s32.totalorder %s21, 0
      %p188 = por %p186, %p187
      %p189 = scmp.ne.s32.totalorder %s181, %s183
      %p190 = scmp.eq.s32.totalorder %s26, 1
      %p191 = por %p189, %p190
      %p192 = scmp.ne.s32.totalorder %s183, %s184
      %p193 = scmp.eq.s32.totalorder %s26, 0
      %p194 = por %p192, %p193
      %p195 = scmp.ne.s32.totalorder %s183, %s184
      %p196 = scmp.eq.s32.totalorder %s27, 1
      %p197 = por %p195, %p196
      %p199 = scmp.ne.s32.totalorder %s184, %s198
      %p200 = scmp.eq.s32.totalorder %s27, 0
      %p201 = por %p199, %p200
      %s202 = ssub.s32 %s21, %s28
      %p203 = scmp.eq.s32.totalorder %s202, 0
      %s205 = sadd.s32 %s204, 1
      %s206 = scalar_select %p203, %s204, %s205
      %p209 = pneg %p203
      %p210 = scmp.eq.s32.totalorder %s21, 1
      %p211 = por %p209, %p210
      %p212 = scmp.ne.s32.totalorder %s204, %s207
      %p213 = scmp.eq.s32.totalorder %s21, 0
      %p214 = por %p212, %p213
      %p215 = scmp.ne.s32.totalorder %s204, %s207
      %p216 = scmp.eq.s32.totalorder %s26, 1
      %p217 = por %p215, %p216
      %p218 = scmp.ne.s32.totalorder %s207, %s208
      %p219 = scmp.eq.s32.totalorder %s26, 0
      %p220 = por %p218, %p219
      %p221 = scmp.ne.s32.totalorder %s207, %s208
      %p222 = scmp.eq.s32.totalorder %s27, 1
      %p223 = por %p221, %p222
      %p225 = scmp.ne.s32.totalorder %s208, %s224
      %p226 = scmp.eq.s32.totalorder %s27, 0
      %p227 = por %p225, %p226
      %p228 = scmp.le.s32.totalorder 1, %s21
      %p229 = scmp.lt.s32.totalorder %s21, 3
      %p230 = pnand %p228, %p229
      %p231 = pneg %p230
      // Predicated region
      $region9: #{tpu_custom_call.1} parent=5 // pred_check
        _
      $region10: #{tpu_custom_call.1} parent=5 // pred_check_branch
        %233 = sbr.rel (%p230) target = $region12
      $region11: #{tpu_custom_call.1} parent=5 // pred_region
        %s234 = ssub.s32 %s21, 1
        // Predicated region
        $region13: #{tpu_custom_call.1} parent=11 // pred_check
          %p235 = pneg %p68
        $region14: #{tpu_custom_call.1} parent=11 // pred_check_branch
          %237 = sbr.rel (%p235) target = $region16
        $region15: #{tpu_custom_call.1} parent=11 // pred_region
          %s239 = ssub.s32 128, 128
          %240 = vsyncadd [#allocation6], %s239
          %s241 = sshll.u32 [#allocation5], 4
          %s242 = int_to_ptr.vmem [resolvable:$true] %s241
          %247 = dma.hbm_to_vmem [thread:$0]  %s1, 128, %s242, [#allocation6], 64, 64, 4
        $region16: #{tpu_custom_call.1} parent=11 // pred_fallthru
          _
        // Predicated region
        $region17: #{tpu_custom_call.1} parent=11 // pred_check
          %p248 = pneg %p89
        $region18: #{tpu_custom_call.1} parent=11 // pred_check_branch
          %250 = sbr.rel (%p248) target = $region20
        $region19: #{tpu_custom_call.1} parent=11 // pred_region
          _
        $region20: #{tpu_custom_call.1} parent=11 // pred_fallthru
          _
        // Predicated region
        $region21: #{tpu_custom_call.1} parent=11 // pred_check
          %p251 = pneg %p110
        $region22: #{tpu_custom_call.1} parent=11 // pred_check_branch
          %253 = sbr.rel (%p251) target = $region24
        $region23: #{tpu_custom_call.1} parent=11 // pred_region
          %s255 = ssub.s32 256, 256
          %256 = vsyncadd [#allocation6], %s255
          %s257 = sshll.u32 [#allocation7], 4
          %s258 = int_to_ptr.vmem [resolvable:$true] %s257
          %263 = dma.hbm_to_vmem [thread:$0]  %s3, 256, %s258, [#allocation6], 64, 64, 4
        $region24: #{tpu_custom_call.1} parent=11 // pred_fallthru
          _
        // Predicated region
        $region25: #{tpu_custom_call.1} parent=11 // pred_check
          %p264 = pneg %p131
        $region26: #{tpu_custom_call.1} parent=11 // pred_check_branch
          %266 = sbr.rel (%p264) target = $region28
        $region27: #{tpu_custom_call.1} parent=11 // pred_region
          _
        $region28: #{tpu_custom_call.1} parent=11 // pred_fallthru
          _
        // Predicated region
        $region29: #{tpu_custom_call.1} parent=11 // pred_check
          %p267 = pneg %p152
        $region30: #{tpu_custom_call.1} parent=11 // pred_check_branch
          %269 = sbr.rel (%p267) target = $region32
        $region31: #{tpu_custom_call.1} parent=11 // pred_region
          _
        $region32: #{tpu_custom_call.1} parent=11 // pred_fallthru
          _
        // Predicated region
        $region33: #{tpu_custom_call.1} parent=11 // pred_check
          %p270 = pneg %p173
        $region34: #{tpu_custom_call.1} parent=11 // pred_check_branch
          %272 = sbr.rel (%p270) target = $region36
        $region35: #{tpu_custom_call.1} parent=11 // pred_region
          _
        $region36: #{tpu_custom_call.1} parent=11 // pred_fallthru
          _
        // Predicated region
        $region37: #{tpu_custom_call.1} parent=11 // pred_check
          %p273 = pneg %p194
        $region38: #{tpu_custom_call.1} parent=11 // pred_check_branch
          %275 = sbr.rel (%p273) target = $region40
        $region39: #{tpu_custom_call.1} parent=11 // pred_region
          _
        $region40: #{tpu_custom_call.1} parent=11 // pred_fallthru
          _
      $region12: #{tpu_custom_call.1} parent=5 // pred_fallthru
        _
      %p276 = scmp.lt.s32.totalorder %s21, 2
      // Predicated region
      $region41: #{tpu_custom_call.1} parent=5 // pred_check
        %p277 = pneg %p276
      $region42: #{tpu_custom_call.1} parent=5 // pred_check_branch
        %279 = sbr.rel (%p277) target = $region44
      $region43: #{tpu_custom_call.1} parent=5 // pred_region
        // Predicated region
        $region45: #{tpu_custom_call.1} parent=43 // pred_check
          %p280 = pneg %p41
        $region46: #{tpu_custom_call.1} parent=43 // pred_check_branch
          %282 = sbr.rel (%p280) target = $region48
        $region47: #{tpu_custom_call.1} parent=43 // pred_region
          %s283 = sand.u32 %s31, 1
          %s284 = scalar_lea.sflag [#allocation3], %s283
          %s285 = sand.u32 %s31, 1
          %s286 = smul.addr %s285, 8
          %s287 = scalar_lea.vmem [#allocation2], %s286
          %s289 = ssub.s32 128, 128
          %290 = vsyncadd %s284, %s289
          %s291 = smul.addr %s21, 128
          %s292 = scalar_lea.hbm %s0, %s291
          %s294 = sshll.u32 %s287, 4
          %s295 = int_to_ptr.vmem [resolvable:$true] %s294
          %297 = dma.hbm_to_vmem [thread:$0]  %s292, 128, %s295, %s284
        $region48: #{tpu_custom_call.1} parent=43 // pred_fallthru
          _
      $region44: #{tpu_custom_call.1} parent=5 // pred_fallthru
        _
      %p298 = scmp.le.s32.totalorder 1, %s21
      %p299 = scmp.lt.s32.totalorder %s21, 3
      %p300 = pnand %p298, %p299
      %p301 = pneg %p300
      // Predicated region
      $region49: #{tpu_custom_call.1} parent=5 // pred_check
        _
      $region50: #{tpu_custom_call.1} parent=5 // pred_check_branch
        %303 = sbr.rel (%p300) target = $region52
      $region51: #{tpu_custom_call.1} parent=5 // pred_region
        %s304 = ssub.s32 %s21, 1
        %s305 = sand.u32 %s34, 1
        %s306 = scalar_lea.sflag [#allocation3], %s305
        %s307 = sand.u32 %s34, 1
        %s308 = smul.addr %s307, 8
        %s309 = scalar_lea.vmem [#allocation2], %s308
        // Predicated region
        $region53: #{tpu_custom_call.1} parent=51 // pred_check
          %p310 = pneg %p47
        $region54: #{tpu_custom_call.1} parent=51 // pred_check_branch
          %312 = sbr.rel (%p310) target = $region56
        $region55: #{tpu_custom_call.1} parent=51 // pred_region
          %313 = dma.done %s306, 128
        $region56: #{tpu_custom_call.1} parent=51 // pred_fallthru
          _
        // Predicated region
        $region57: #{tpu_custom_call.1} parent=51 // pred_check
          %p314 = pneg %p68
        $region58: #{tpu_custom_call.1} parent=51 // pred_check_branch
          %316 = sbr.rel (%p314) target = $region60
        $region59: #{tpu_custom_call.1} parent=51 // pred_region
          %317 = dma.done [#allocation6], 128
        $region60: #{tpu_custom_call.1} parent=51 // pred_fallthru
          _
        // Predicated region
        $region61: #{tpu_custom_call.1} parent=51 // pred_check
          %p318 = pneg %p110
        $region62: #{tpu_custom_call.1} parent=51 // pred_check_branch
          %320 = sbr.rel (%p318) target = $region64
        $region63: #{tpu_custom_call.1} parent=51 // pred_region
          %321 = dma.done [#allocation6], 256
        $region64: #{tpu_custom_call.1} parent=51 // pred_fallthru
          _
        %s322 = sand.u32 %s34, 1
        %s323 = scalar_lea.sflag [#allocation3], %s322
        %s324 = sand.u32 %s34, 1
        %s325 = smul.addr %s324, 8
        %s326 = scalar_lea.vmem [#allocation2], %s325
        %p327 = pneg %p47
        %p328 = pneg %p44
        %p329 = pneg %p68
        %p330 = pneg %p65
        %p331 = pneg %p89
        %p332 = pneg %p86
        %p333 = pneg %p110
        %p334 = pneg %p107
        %p335 = pneg %p131
        %p336 = pneg %p128
        %p337 = pneg %p152
        %p338 = pneg %p149
        %p339 = pneg %p173
        %p340 = pneg %p170
        %p341 = pneg %p194
        %p342 = pneg %p191
        %p343 = pneg %p220
        %p344 = pneg %p217
        %s345 = sand.u32 %s207, 1
        %s346 = scalar_lea.sflag [#allocation4], %s345
        %s347 = sand.u32 %s207, 1
        %s348 = smul.addr %s347, 8
        %s349 = scalar_lea.vmem [#allocation8], %s348
        %v351 = vld [vmem:[%s309] sm:$0xff]
        %v352 = vpack.c.bf16 %v351, %v351
        %v353 = vld [vmem:[#allocation5] sm:$0xf]
        %v354 = vld [vmem:[#allocation5 + $0x4] sm:$0xf]
        %v355 = vld [vmem:[%s2] sm:$0x1]
        %v357 = vlaneseq
        %v358 = vshrl.u32 %v357, 7
        %v359 = vsub.s32 0, %v358
        %v360 = vrot.slane %v355, %v359
        %v364 = vunpack.c.l.b16 %v353
        %v365 = vunpack.c.l.b16 %v354
        %v366 = vpack.c.b16 %v365, %v364
        %vm368 = vcmask 130048
        %v370 = vsel %vm368, %v352, 0
        %372 = vmatprep.subr.bf16.mxu0 0
        %373 = vmatpush1.bf16.msra.mxu0 0
        %374 = vmatprep.subr.bf16.mxu0 0
        %375 = vmatpush1.bf16.msra.mxu0 0
        %376 = vmatprep.subr.bf16.mxu0 0
        %377 = vmatpush1.bf16.msra.mxu0 0
        %378 = vmatprep.subr.bf16.mxu0 0
        %379 = vmatpush1.bf16.msra.mxu0 0
        %380 = vmatprep.subr.bf16.mxu0 0
        %381 = vmatpush1.bf16.msra.mxu0 0
        %382 = vmatprep.subr.bf16.mxu0 0
        %383 = vmatpush1.bf16.msra.mxu0 0
        %384 = vmatprep.subr.bf16.mxu0 0
        %385 = vmatpush1.bf16.msra.mxu0 0
        %386 = vmatprep.subr.bf16.mxu0 0
        %387 = vmatpush1.bf16.msra.mxu0 %v366
        %388 = vmatprep.subr.bf16.mxu0 0
        %389 = vmatpush2.bf16.msra.mxu0 0
        %390 = vmatprep.subr.bf16.mxu0 0
        %391 = vmatpush2.bf16.msra.mxu0 0
        %392 = vmatprep.subr.bf16.mxu0 0
        %393 = vmatpush2.bf16.msra.mxu0 0
        %394 = vmatprep.subr.bf16.mxu0 0
        %395 = vmatpush2.bf16.msra.mxu0 0
        %396 = vmatprep.subr.bf16.mxu0 0
        %397 = vmatpush2.bf16.msra.mxu0 0
        %398 = vmatprep.subr.bf16.mxu0 0
        %399 = vmatpush2.bf16.msra.mxu0 0
        %400 = vmatprep.subr.bf16.mxu0 0
        %401 = vmatpush2.bf16.msra.mxu0 0
        %402 = vmatprep.subr.bf16.mxu0 0
        %403 = vmatpush2.bf16.msra.mxu0 0
        %404 = vmatprep.mubr.bf16.mxu0 0
        %405 = vmatmul.mubr.bf16.gmra.mxu0 %v370
        %v406 = vpop.f32.mrf.mxu0
        %v407 = vadd.f32 %v360, %v406
        %v408 = vpop.f32.mrf.mxu0
        %v409 = vpop.f32.mrf.mxu0
        %v410 = vpop.f32.mrf.mxu0
        %411 = vdwg.mxu0
        %v412 = vmax.f32 %v407, 0.0
        %v413 = vpack.c.bf16 %v412, %v412
        %v414 = vld [vmem:[#allocation7] sm:$0xf]
        %v415 = vld [vmem:[#allocation7 + $0x4] sm:$0xf]
        %v416 = vld [vmem:[#allocation7 + $0x8] sm:$0xf]
        %v417 = vld [vmem:[#allocation7 + $0xc] sm:$0xf]
        %v418 = vld [vmem:[%s4] sm:$0x1]
        %v420 = vlaneseq
        %v421 = vshrl.u32 %v420, 7
        %v422 = vsub.s32 0, %v421
        %v423 = vrot.slane %v418, %v422
        %v429 = vunpack.c.l.b16 %v414
        %v430 = vunpack.c.l.b16 %v415
        %v431 = vunpack.c.l.b16 %v416
        %v432 = vunpack.c.l.b16 %v417
        %v433 = vpack.c.b16 %v430, %v429
        %v434 = vpack.c.b16 %v432, %v431
        %vm437 = vcmask 261120
        %v439 = vsel %vm437, %v413, 0
        %441 = vmatprep.subr.bf16.mxu0 0
        %442 = vmatpush1.bf16.msra.mxu0 0
        %443 = vmatprep.subr.bf16.mxu0 0
        %444 = vmatpush1.bf16.msra.mxu0 0
        %445 = vmatprep.subr.bf16.mxu0 0
        %446 = vmatpush1.bf16.msra.mxu0 0
        %447 = vmatprep.subr.bf16.mxu0 0
        %448 = vmatpush1.bf16.msra.mxu0 0
        %449 = vmatprep.subr.bf16.mxu0 0
        %450 = vmatpush1.bf16.msra.mxu0 0
        %451 = vmatprep.subr.bf16.mxu0 0
        %452 = vmatpush1.bf16.msra.mxu0 0
        %453 = vmatprep.subr.bf16.mxu0 0
        %454 = vmatpush1.bf16.msra.mxu0 %v434
        %455 = vmatprep.subr.bf16.mxu0 0
        %456 = vmatpush1.bf16.msra.mxu0 %v433
        %457 = vmatprep.subr.bf16.mxu0 0
        %458 = vmatpush2.bf16.msra.mxu0 0
        %459 = vmatprep.subr.bf16.mxu0 0
        %460 = vmatpush2.bf16.msra.mxu0 0
        %461 = vmatprep.subr.bf16.mxu0 0
        %462 = vmatpush2.bf16.msra.mxu0 0
        %463 = vmatprep.subr.bf16.mxu0 0
        %464 = vmatpush2.bf16.msra.mxu0 0
        %465 = vmatprep.subr.bf16.mxu0 0
        %466 = vmatpush2.bf16.msra.mxu0 0
        %467 = vmatprep.subr.bf16.mxu0 0
        %468 = vmatpush2.bf16.msra.mxu0 0
        %469 = vmatprep.subr.bf16.mxu0 0
        %470 = vmatpush2.bf16.msra.mxu0 0
        %471 = vmatprep.subr.bf16.mxu0 0
        %472 = vmatpush2.bf16.msra.mxu0 0
        %473 = vmatprep.mubr.bf16.mxu0 0
        %474 = vmatmul.mubr.bf16.gmra.mxu0 %v439
        %v475 = vpop.f32.mrf.mxu0
        %v476 = vadd.f32 %v423, %v475
        %v477 = vpop.f32.mrf.mxu0
        %v478 = vpop.f32.mrf.mxu0
        %v479 = vpop.f32.mrf.mxu0
        %480 = vdwg.mxu0
        %v481 = vsel %vm437, %v476, 0.0
        %482 = vadd.xlane.f32.xlu0 %v481
        %v483 = vpop.xlane.xlu0 %482
        %v484 = vrcp.pop 32.0
        %v485 = vmul.f32 %v483, %v484
        %v486 = vsub.f32 %v476, %v485
        %v487 = vmul.f32 %v486, %v486
        %v488 = vsel %vm437, %v487, 0.0
        %489 = vadd.xlane.f32.xlu0 %v488
        %v490 = vpop.xlane.xlu0 %489
        %v491 = vmul.f32 %v490, %v484
        %v492 = vadd.f32 %v491, 1e-05
        %v493 = vrsqrt.pop %v492
        %v494 = vmul.f32 %v486, %v493
        %v495 = vld [vmem:[%s5] sm:$0x1]
        %v497 = vlaneseq
        %v498 = vshrl.u32 %v497, 7
        %v499 = vsub.s32 0, %v498
        %v500 = vrot.slane %v495, %v499
        %v502 = vmul.f32 %v494, %v500
        %v503 = vld [vmem:[%s6] sm:$0x1]
        %v505 = vlaneseq
        %v506 = vshrl.u32 %v505, 7
        %v507 = vsub.s32 0, %v506
        %v508 = vrot.slane %v503, %v507
        %v510 = vadd.f32 %v502, %v508
        %v511 = vmax.f32 %v510, 0.0
        %v512 = vmul.f32 %v511, 5.656854
        %v513 = vld [vmem:[%s7] sm:$0xff]
        %v514 = vadd.f32 %v512, %v513
        %515 = vst.msk [vmem:[%s349] sm:$0xff] %vm437, %v514
        %s516 = sand.u32 %s207, 1
        %s517 = scalar_lea.sflag [#allocation4], %s516
        %s518 = sand.u32 %s207, 1
        %s519 = smul.addr %s518, 8
        %s520 = scalar_lea.vmem [#allocation8], %s519
        // Predicated region
        $region65: #{tpu_custom_call.1} parent=51 // pred_check
          %p521 = pneg %p217
        $region66: #{tpu_custom_call.1} parent=51 // pred_check_branch
          %523 = sbr.rel (%p521) target = $region68
        $region67: #{tpu_custom_call.1} parent=51 // pred_region
          %s525 = ssub.s32 128, 128
          %526 = vsyncadd %s517, %s525
          %s527 = smul.addr %s26, 128
          %s528 = scalar_lea.hbm %s8, %s527
          %s530 = sshll.u32 %s520, 4
          %s531 = int_to_ptr.vmem [resolvable:$true] %s530
          %533 = dma.vmem_to_hbm [thread:$0]  %s531, 128, %s528, %s517
        $region68: #{tpu_custom_call.1} parent=51 // pred_fallthru
          _
      $region52: #{tpu_custom_call.1} parent=5 // pred_fallthru
        _
      %p534 = scmp.le.s32.totalorder 2, %s21
      // Predicated region
      $region69: #{tpu_custom_call.1} parent=5 // pred_check
        %p535 = pneg %p534
      $region70: #{tpu_custom_call.1} parent=5 // pred_check_branch
        %537 = sbr.rel (%p535) target = $region72
      $region71: #{tpu_custom_call.1} parent=5 // pred_region
        %s538 = ssub.s32 %s21, 2
        // Predicated region
        $region73: #{tpu_custom_call.1} parent=71 // pred_check
          %p539 = pneg %p223
        $region74: #{tpu_custom_call.1} parent=71 // pred_check_branch
          %541 = sbr.rel (%p539) target = $region76
        $region75: #{tpu_custom_call.1} parent=71 // pred_region
          %s542 = sand.u32 %s208, 1
          %s543 = scalar_lea.sflag [#allocation4], %s542
          %s544 = sand.u32 %s208, 1
          %s545 = smul.addr %s544, 8
          %s546 = scalar_lea.vmem [#allocation8], %s545
          %547 = dma.done %s543, 128
        $region76: #{tpu_custom_call.1} parent=71 // pred_fallthru
          _
      $region72: #{tpu_custom_call.1} parent=5 // pred_fallthru
        _
    $region6: #{tpu_custom_call.1} parent=1 // loop_footer
      %s25 = sadd.s32 1, %s21
    $region7: #{tpu_custom_call.1} parent=1 // loop_footer_branch
      %20 = sbr.rel target = $region3
    $region8: #{tpu_custom_call.1} parent=1 // loop_exit
      _
    %548 = vsyncpa [#allocation3], 1
    %s549 = scalar_lea.sflag [#allocation3], 1
    %550 = vsyncpa %s549, 1
    %551 = vsyncpa [#allocation6], 1
    %552 = vsyncpa [#allocation4], 1
    %s553 = scalar_lea.sflag [#allocation4], 1
    %554 = vsyncpa %s553, 1

</llo_original>
